<compile_context>
chip_gen: v7x
topology: tpu7x:2x2x1
jax: 0.10.0
libtpu: 0.0.40
codegen_flags: <defaults>
</compile_context>

<pallas_src>
import jax
import jax.numpy as jnp
from jax import lax
from jax.experimental import pallas as pl
from jax.experimental.pallas import tpu as pltpu


def lstm_kernel(gx_ref, whh_ref, wlin_ref, blin_ref, hn_ref, cn_ref, logits_ref):
    # gx_ref:    (T, Bp, 4H)  precomputed x @ Wih^T + bias (g-block pre-scaled x2)
    # whh_ref:   (H, 4H)      W_hh^T (g-block columns pre-scaled x2)
    # wlin_ref:  (H, 128)     W_lin^T zero-padded to lane width
    # blin_ref:  (1, 128)     b_lin zero-padded
    # hn_ref / cn_ref: (Bp, H)
    # logits_ref: (Bp, 128)   lane-dense padded logits
    Bp, H = hn_ref.shape
    T = gx_ref.shape[0]

    whh = whh_ref[...]                                         # (H, 4H)

    h = jnp.zeros((Bp, H), jnp.float32)
    c = jnp.zeros((Bp, H), jnp.float32)

    # Static unroll: T is a compile-time constant; h/c live in vregs, gx is
    # streamed one (Bp, 4H) tile per step from VMEM.
    for t in range(T):
        gates = gx_ref[t] + jnp.dot(h, whh,
                                    preferred_element_type=jnp.float32)  # (Bp, 4H)
        # Single full-width EUP pass.  sigmoid = 1 / (1 + exp(-x)); exp on the
        # EUP, reciprocal exact (approx=True would risk the 1e-4 tolerance).
        sig = pl.reciprocal(1.0 + jnp.exp(-gates))             # (Bp, 4H)
        i_g = sig[:, 0 * H:1 * H]
        f_g = sig[:, 1 * H:2 * H]
        g_g = 2.0 * sig[:, 2 * H:3 * H] - 1.0   # = tanh(original g pre-activation)
        o_g = sig[:, 3 * H:4 * H]
        c = f_g * c + i_g * g_g
        h = o_g * jnp.tanh(c)

    hn_ref[...] = h
    cn_ref[...] = c
    # Folded final projection: lane-dense (Bp, 128) store; wrapper slices [:, :2].
    logits_ref[...] = jnp.dot(h, wlin_ref[...],
                              preferred_element_type=jnp.float32) + blin_ref[...]


def lstm_forward(token_ids, params):
    """token_ids: int32 [B, T].  Returns (logits [B,2], hn [1,B,H], cn [1,B,H])."""
    emb, w_ih, w_hh, b_ih, b_hh, w_lin, b_lin = (
        params["emb"], params["w_ih"], params["w_hh"],
        params["b_ih"], params["b_hh"], params["w_lin"], params["b_lin"])

    B, T = token_ids.shape
    H = w_hh.shape[1]
    O = w_lin.shape[0]

    SUBLANE = 8
    LANE = 128
    Bp = ((B + SUBLANE - 1) // SUBLANE) * SUBLANE   # pad batch to sublane multiple

    # g-gate pre-scale by 2 so the kernel can use tanh(x) = 2*sigmoid(2x) - 1.
    g_scale = jnp.ones((4 * H,), jnp.float32).at[2 * H:3 * H].set(2.0)

    # Vocab-indexed input-projection table (weights fixed -> reused across
    # calls; replaces gather+matmul with a single gather of 4H-wide rows).
    bias = (b_ih + b_hh).astype(jnp.float32)
    gx_table = (emb.astype(jnp.float32) @ w_ih.T.astype(jnp.float32)
                + bias[None, :]) * g_scale[None, :]            # (vocab, 4H)

    whh_t = w_hh.T.astype(jnp.float32) * g_scale[None, :]      # (H, 4H)

    # Gather + time-major layout (padded batch rows use token 0; sliced away).
    ids_p = jnp.pad(token_ids, ((0, Bp - B), (0, 0)))          # (Bp, T)
    gx = jnp.take(gx_table, ids_p, axis=0)                     # (Bp, T, 4H)
    gx = jnp.transpose(gx, (1, 0, 2))                          # (T, Bp, 4H)

    # Folded, lane-dense final projection weights.
    wlin_pad = jnp.zeros((H, LANE), jnp.float32).at[:, :O].set(
        w_lin.T.astype(jnp.float32))                           # (H, 128)
    blin_pad = jnp.zeros((1, LANE), jnp.float32).at[0, :O].set(
        b_lin.astype(jnp.float32))                             # (1, 128)

    vmem = pl.BlockSpec(memory_space=pltpu.MemorySpace.VMEM)
    hn_p, cn_p, logits_p = pl.pallas_call(
        lstm_kernel,
        out_shape=(
            jax.ShapeDtypeStruct((Bp, H), jnp.float32),
            jax.ShapeDtypeStruct((Bp, H), jnp.float32),
            jax.ShapeDtypeStruct((Bp, LANE), jnp.float32),
        ),
        in_specs=[vmem] * 4,
        out_specs=(vmem, vmem, vmem),
    )(gx, whh_t, wlin_pad, blin_pad)

    hn = hn_p[:B]
    cn = cn_p[:B]
    logits = logits_p[:B, :O]
    return logits, hn[None, :, :], cn[None, :, :]


def lstm_reference(token_ids, params):
    """Pure-JAX reference mirroring torch.nn.LSTM semantics (gate order i,f,g,o)."""
    emb, w_ih, w_hh, b_ih, b_hh, w_lin, b_lin = (
        params["emb"], params["w_ih"], params["w_hh"],
        params["b_ih"], params["b_hh"], params["w_lin"], params["b_lin"])
    H = w_hh.shape[1]
    x = jnp.take(emb, token_ids, axis=0)              # (B, T, E)
    B = x.shape[0]

    def step(carry, x_t):
        h, c = carry
        gates = x_t @ w_ih.T + b_ih + h @ w_hh.T + b_hh
        i_g = jax.nn.sigmoid(gates[:, 0 * H:1 * H])
        f_g = jax.nn.sigmoid(gates[:, 1 * H:2 * H])
        g_g = jnp.tanh(gates[:, 2 * H:3 * H])
        o_g = jax.nn.sigmoid(gates[:, 3 * H:4 * H])
        c_new = f_g * c + i_g * g_g
        h_new = o_g * jnp.tanh(c_new)
        return (h_new, c_new), None

    h0 = jnp.zeros((B, H), jnp.float32)
    c0 = jnp.zeros((B, H), jnp.float32)
    (hn, cn), _ = lax.scan(step, (h0, c0), jnp.transpose(x, (1, 0, 2)))
    logits = hn @ w_lin.T + b_lin
    return logits, hn[None], cn[None]


if __name__ == "__main__":
    # small shapes consistent with the module's forward
    vocab_size = 100
    embedding_dim = 32   # E
    hidden_units = 32    # H  (4H = 128 -> lane-dense gates tile)
    batch = 2            # B
    seq = 8              # T

    key = jax.random.PRNGKey(0)
    ks = jax.random.split(key, 8)
    scale = 1.0 / jnp.sqrt(hidden_units)
    params = {
        "emb":   jax.random.normal(ks[0], (vocab_size, embedding_dim), jnp.float32),
        "w_ih":  jax.random.uniform(ks[1], (4 * hidden_units, embedding_dim),
                                    jnp.float32, -scale, scale),
        "w_hh":  jax.random.uniform(ks[2], (4 * hidden_units, hidden_units),
                                    jnp.float32, -scale, scale),
        "b_ih":  jax.random.uniform(ks[3], (4 * hidden_units,), jnp.float32, -scale, scale),
        "b_hh":  jax.random.uniform(ks[4], (4 * hidden_units,), jnp.float32, -scale, scale),
        "w_lin": jax.random.uniform(ks[5], (2, hidden_units), jnp.float32, -scale, scale),
        "b_lin": jax.random.uniform(ks[6], (2,), jnp.float32, -scale, scale),
    }
    token_ids = jax.random.randint(ks[7], (batch, seq), 0, vocab_size, dtype=jnp.int32)

    logits, hn, cn = lstm_forward(token_ids, params)
    jax.block_until_ready((logits, hn, cn))

    ref_logits, ref_hn, ref_cn = lstm_reference(token_ids, params)
    assert jnp.allclose(logits, ref_logits, atol=1e-4, rtol=1e-4)
    assert jnp.allclose(hn, ref_hn, atol=1e-4, rtol=1e-4)
    assert jnp.allclose(cn, ref_cn, atol=1e-4, rtol=1e-4)
    assert logits.shape == (batch, 2)
    assert hn.shape == (1, batch, hidden_units)
    assert cn.shape == (1, batch, hidden_units)

    print("KERNEL_OK")
</pallas_src>

<mosaic_0001>
module attributes {stable_mosaic.version = 11 : i64} {
  func.func @lstm_kernel(%arg0: memref<8x8x128xf32, #tpu.memory_space<vmem>>, %arg1: memref<32x128xf32, #tpu.memory_space<vmem>>, %arg2: memref<32x128xf32, #tpu.memory_space<vmem>>, %arg3: memref<1x128xf32, #tpu.memory_space<vmem>>, %arg4: memref<8x32xf32, #tpu.memory_space<vmem>>, %arg5: memref<8x32xf32, #tpu.memory_space<vmem>>, %arg6: memref<8x128xf32, #tpu.memory_space<vmem>>) attributes {dimension_semantics = [], scalar_prefetch = 0 : i64, scratch_operands = 0 : i64, tpu.core_type = #tpu.core_type<tc>} {
    %c0 = arith.constant 0 : index
    %c0_0 = arith.constant 0 : index
    %0 = vector.load %arg1[%c0, %c0_0] : memref<32x128xf32, #tpu.memory_space<vmem>>, vector<32x128xf32>
    %cst = arith.constant 0.000000e+00 : f32
    %1 = vector.broadcast %cst : f32 to vector<8x32xf32>
    %cst_1 = arith.constant 0.000000e+00 : f32
    %2 = vector.broadcast %cst_1 : f32 to vector<8x32xf32>
    %c0_2 = arith.constant 0 : index
    %c0_3 = arith.constant 0 : index
    %c0_4 = arith.constant 0 : index
    %3 = vector.load %arg0[%c0_2, %c0_3, %c0_4] : memref<8x8x128xf32, #tpu.memory_space<vmem>>, vector<1x8x128xf32>
    %4 = vector.shape_cast %3 : vector<1x8x128xf32> to vector<8x128xf32>
    %cst_5 = arith.constant dense<0.000000e+00> : vector<8x128xf32>
    %5 = tpu.matmul %1, %0, %cst_5 {dimension_numbers = #tpu.dot_dimension_numbers<[1], [0], [0], [1], [0, 0, 1, 1], [], []>} : vector<8x32xf32>, vector<32x128xf32>, vector<8x128xf32> -> vector<8x128xf32>
    %6 = arith.addf %4, %5 : vector<8x128xf32>
    %cst_6 = arith.constant 0.000000e+00 : f32
    %7 = vector.broadcast %cst_6 : f32 to vector<8x128xf32>
    %8 = arith.subf %7, %6 : vector<8x128xf32>
    %9 = math.exp %8 : vector<8x128xf32>
    %cst_7 = arith.constant 1.000000e+00 : f32
    %10 = vector.broadcast %cst_7 : f32 to vector<8x128xf32>
    %11 = arith.addf %10, %9 : vector<8x128xf32>
    %12 = tpu.reciprocal %11 : vector<8x128xf32> -> vector<8x128xf32>
    %13 = vector.extract_strided_slice %12 {offsets = [0, 0], sizes = [8, 32], strides = [1, 1]} : vector<8x128xf32> to vector<8x32xf32>
    %14 = vector.extract_strided_slice %12 {offsets = [0, 32], sizes = [8, 32], strides = [1, 1]} : vector<8x128xf32> to vector<8x32xf32>
    %15 = vector.extract_strided_slice %12 {offsets = [0, 64], sizes = [8, 32], strides = [1, 1]} : vector<8x128xf32> to vector<8x32xf32>
    %cst_8 = arith.constant 2.000000e+00 : f32
    %16 = vector.broadcast %cst_8 : f32 to vector<8x32xf32>
    %17 = arith.mulf %16, %15 : vector<8x32xf32>
    %cst_9 = arith.constant 1.000000e+00 : f32
    %18 = vector.broadcast %cst_9 : f32 to vector<8x32xf32>
    %19 = arith.subf %17, %18 : vector<8x32xf32>
    %20 = vector.extract_strided_slice %12 {offsets = [0, 96], sizes = [8, 32], strides = [1, 1]} : vector<8x128xf32> to vector<8x32xf32>
    %21 = arith.mulf %14, %2 : vector<8x32xf32>
    %22 = arith.mulf %13, %19 : vector<8x32xf32>
    %23 = arith.addf %21, %22 : vector<8x32xf32>
    %24 = math.tanh %23 : vector<8x32xf32>
    %25 = arith.mulf %20, %24 : vector<8x32xf32>
    %c1 = arith.constant 1 : index
    %c0_10 = arith.constant 0 : index
    %c0_11 = arith.constant 0 : index
    %26 = vector.load %arg0[%c1, %c0_10, %c0_11] : memref<8x8x128xf32, #tpu.memory_space<vmem>>, vector<1x8x128xf32>
    %27 = vector.shape_cast %26 : vector<1x8x128xf32> to vector<8x128xf32>
    %cst_12 = arith.constant dense<0.000000e+00> : vector<8x128xf32>
    %28 = tpu.matmul %25, %0, %cst_12 {dimension_numbers = #tpu.dot_dimension_numbers<[1], [0], [0], [1], [0, 0, 1, 1], [], []>} : vector<8x32xf32>, vector<32x128xf32>, vector<8x128xf32> -> vector<8x128xf32>
    %29 = arith.addf %27, %28 : vector<8x128xf32>
    %cst_13 = arith.constant 0.000000e+00 : f32
    %30 = vector.broadcast %cst_13 : f32 to vector<8x128xf32>
    %31 = arith.subf %30, %29 : vector<8x128xf32>
    %32 = math.exp %31 : vector<8x128xf32>
    %cst_14 = arith.constant 1.000000e+00 : f32
    %33 = vector.broadcast %cst_14 : f32 to vector<8x128xf32>
    %34 = arith.addf %33, %32 : vector<8x128xf32>
    %35 = tpu.reciprocal %34 : vector<8x128xf32> -> vector<8x128xf32>
    %36 = vector.extract_strided_slice %35 {offsets = [0, 0], sizes = [8, 32], strides = [1, 1]} : vector<8x128xf32> to vector<8x32xf32>
    %37 = vector.extract_strided_slice %35 {offsets = [0, 32], sizes = [8, 32], strides = [1, 1]} : vector<8x128xf32> to vector<8x32xf32>
    %38 = vector.extract_strided_slice %35 {offsets = [0, 64], sizes = [8, 32], strides = [1, 1]} : vector<8x128xf32> to vector<8x32xf32>
    %cst_15 = arith.constant 2.000000e+00 : f32
    %39 = vector.broadcast %cst_15 : f32 to vector<8x32xf32>
    %40 = arith.mulf %39, %38 : vector<8x32xf32>
    %cst_16 = arith.constant 1.000000e+00 : f32
    %41 = vector.broadcast %cst_16 : f32 to vector<8x32xf32>
    %42 = arith.subf %40, %41 : vector<8x32xf32>
    %43 = vector.extract_strided_slice %35 {offsets = [0, 96], sizes = [8, 32], strides = [1, 1]} : vector<8x128xf32> to vector<8x32xf32>
    %44 = arith.mulf %37, %23 : vector<8x32xf32>
    %45 = arith.mulf %36, %42 : vector<8x32xf32>
    %46 = arith.addf %44, %45 : vector<8x32xf32>
    %47 = math.tanh %46 : vector<8x32xf32>
    %48 = arith.mulf %43, %47 : vector<8x32xf32>
    %c2 = arith.constant 2 : index
    %c0_17 = arith.constant 0 : index
    %c0_18 = arith.constant 0 : index
    %49 = vector.load %arg0[%c2, %c0_17, %c0_18] : memref<8x8x128xf32, #tpu.memory_space<vmem>>, vector<1x8x128xf32>
    %50 = vector.shape_cast %49 : vector<1x8x128xf32> to vector<8x128xf32>
    %cst_19 = arith.constant dense<0.000000e+00> : vector<8x128xf32>
    %51 = tpu.matmul %48, %0, %cst_19 {dimension_numbers = #tpu.dot_dimension_numbers<[1], [0], [0], [1], [0, 0, 1, 1], [], []>} : vector<8x32xf32>, vector<32x128xf32>, vector<8x128xf32> -> vector<8x128xf32>
    %52 = arith.addf %50, %51 : vector<8x128xf32>
    %cst_20 = arith.constant 0.000000e+00 : f32
    %53 = vector.broadcast %cst_20 : f32 to vector<8x128xf32>
    %54 = arith.subf %53, %52 : vector<8x128xf32>
    %55 = math.exp %54 : vector<8x128xf32>
    %cst_21 = arith.constant 1.000000e+00 : f32
    %56 = vector.broadcast %cst_21 : f32 to vector<8x128xf32>
    %57 = arith.addf %56, %55 : vector<8x128xf32>
    %58 = tpu.reciprocal %57 : vector<8x128xf32> -> vector<8x128xf32>
    %59 = vector.extract_strided_slice %58 {offsets = [0, 0], sizes = [8, 32], strides = [1, 1]} : vector<8x128xf32> to vector<8x32xf32>
    %60 = vector.extract_strided_slice %58 {offsets = [0, 32], sizes = [8, 32], strides = [1, 1]} : vector<8x128xf32> to vector<8x32xf32>
    %61 = vector.extract_strided_slice %58 {offsets = [0, 64], sizes = [8, 32], strides = [1, 1]} : vector<8x128xf32> to vector<8x32xf32>
    %cst_22 = arith.constant 2.000000e+00 : f32
    %62 = vector.broadcast %cst_22 : f32 to vector<8x32xf32>
    %63 = arith.mulf %62, %61 : vector<8x32xf32>
    %cst_23 = arith.constant 1.000000e+00 : f32
    %64 = vector.broadcast %cst_23 : f32 to vector<8x32xf32>
    %65 = arith.subf %63, %64 : vector<8x32xf32>
    %66 = vector.extract_strided_slice %58 {offsets = [0, 96], sizes = [8, 32], strides = [1, 1]} : vector<8x128xf32> to vector<8x32xf32>
    %67 = arith.mulf %60, %46 : vector<8x32xf32>
    %68 = arith.mulf %59, %65 : vector<8x32xf32>
    %69 = arith.addf %67, %68 : vector<8x32xf32>
    %70 = math.tanh %69 : vector<8x32xf32>
    %71 = arith.mulf %66, %70 : vector<8x32xf32>
    %c3 = arith.constant 3 : index
    %c0_24 = arith.constant 0 : index
    %c0_25 = arith.constant 0 : index
    %72 = vector.load %arg0[%c3, %c0_24, %c0_25] : memref<8x8x128xf32, #tpu.memory_space<vmem>>, vector<1x8x128xf32>
    %73 = vector.shape_cast %72 : vector<1x8x128xf32> to vector<8x128xf32>
    %cst_26 = arith.constant dense<0.000000e+00> : vector<8x128xf32>
    %74 = tpu.matmul %71, %0, %cst_26 {dimension_numbers = #tpu.dot_dimension_numbers<[1], [0], [0], [1], [0, 0, 1, 1], [], []>} : vector<8x32xf32>, vector<32x128xf32>, vector<8x128xf32> -> vector<8x128xf32>
    %75 = arith.addf %73, %74 : vector<8x128xf32>
    %cst_27 = arith.constant 0.000000e+00 : f32
    %76 = vector.broadcast %cst_27 : f32 to vector<8x128xf32>
    %77 = arith.subf %76, %75 : vector<8x128xf32>
    %78 = math.exp %77 : vector<8x128xf32>
    %cst_28 = arith.constant 1.000000e+00 : f32
    %79 = vector.broadcast %cst_28 : f32 to vector<8x128xf32>
    %80 = arith.addf %79, %78 : vector<8x128xf32>
    %81 = tpu.reciprocal %80 : vector<8x128xf32> -> vector<8x128xf32>
    %82 = vector.extract_strided_slice %81 {offsets = [0, 0], sizes = [8, 32], strides = [1, 1]} : vector<8x128xf32> to vector<8x32xf32>
    %83 = vector.extract_strided_slice %81 {offsets = [0, 32], sizes = [8, 32], strides = [1, 1]} : vector<8x128xf32> to vector<8x32xf32>
    %84 = vector.extract_strided_slice %81 {offsets = [0, 64], sizes = [8, 32], strides = [1, 1]} : vector<8x128xf32> to vector<8x32xf32>
    %cst_29 = arith.constant 2.000000e+00 : f32
    %85 = vector.broadcast %cst_29 : f32 to vector<8x32xf32>
    %86 = arith.mulf %85, %84 : vector<8x32xf32>
    %cst_30 = arith.constant 1.000000e+00 : f32
    %87 = vector.broadcast %cst_30 : f32 to vector<8x32xf32>
    %88 = arith.subf %86, %87 : vector<8x32xf32>
    %89 = vector.extract_strided_slice %81 {offsets = [0, 96], sizes = [8, 32], strides = [1, 1]} : vector<8x128xf32> to vector<8x32xf32>
    %90 = arith.mulf %83, %69 : vector<8x32xf32>
    %91 = arith.mulf %82, %88 : vector<8x32xf32>
    %92 = arith.addf %90, %91 : vector<8x32xf32>
    %93 = math.tanh %92 : vector<8x32xf32>
    %94 = arith.mulf %89, %93 : vector<8x32xf32>
    %c4 = arith.constant 4 : index
    %c0_31 = arith.constant 0 : index
    %c0_32 = arith.constant 0 : index
    %95 = vector.load %arg0[%c4, %c0_31, %c0_32] : memref<8x8x128xf32, #tpu.memory_space<vmem>>, vector<1x8x128xf32>
    %96 = vector.shape_cast %95 : vector<1x8x128xf32> to vector<8x128xf32>
    %cst_33 = arith.constant dense<0.000000e+00> : vector<8x128xf32>
    %97 = tpu.matmul %94, %0, %cst_33 {dimension_numbers = #tpu.dot_dimension_numbers<[1], [0], [0], [1], [0, 0, 1, 1], [], []>} : vector<8x32xf32>, vector<32x128xf32>, vector<8x128xf32> -> vector<8x128xf32>
    %98 = arith.addf %96, %97 : vector<8x128xf32>
    %cst_34 = arith.constant 0.000000e+00 : f32
    %99 = vector.broadcast %cst_34 : f32 to vector<8x128xf32>
    %100 = arith.subf %99, %98 : vector<8x128xf32>
    %101 = math.exp %100 : vector<8x128xf32>
    %cst_35 = arith.constant 1.000000e+00 : f32
    %102 = vector.broadcast %cst_35 : f32 to vector<8x128xf32>
    %103 = arith.addf %102, %101 : vector<8x128xf32>
    %104 = tpu.reciprocal %103 : vector<8x128xf32> -> vector<8x128xf32>
    %105 = vector.extract_strided_slice %104 {offsets = [0, 0], sizes = [8, 32], strides = [1, 1]} : vector<8x128xf32> to vector<8x32xf32>
    %106 = vector.extract_strided_slice %104 {offsets = [0, 32], sizes = [8, 32], strides = [1, 1]} : vector<8x128xf32> to vector<8x32xf32>
    %107 = vector.extract_strided_slice %104 {offsets = [0, 64], sizes = [8, 32], strides = [1, 1]} : vector<8x128xf32> to vector<8x32xf32>
    %cst_36 = arith.constant 2.000000e+00 : f32
    %108 = vector.broadcast %cst_36 : f32 to vector<8x32xf32>
    %109 = arith.mulf %108, %107 : vector<8x32xf32>
    %cst_37 = arith.constant 1.000000e+00 : f32
    %110 = vector.broadcast %cst_37 : f32 to vector<8x32xf32>
    %111 = arith.subf %109, %110 : vector<8x32xf32>
    %112 = vector.extract_strided_slice %104 {offsets = [0, 96], sizes = [8, 32], strides = [1, 1]} : vector<8x128xf32> to vector<8x32xf32>
    %113 = arith.mulf %106, %92 : vector<8x32xf32>
    %114 = arith.mulf %105, %111 : vector<8x32xf32>
    %115 = arith.addf %113, %114 : vector<8x32xf32>
    %116 = math.tanh %115 : vector<8x32xf32>
    %117 = arith.mulf %112, %116 : vector<8x32xf32>
    %c5 = arith.constant 5 : index
    %c0_38 = arith.constant 0 : index
    %c0_39 = arith.constant 0 : index
    %118 = vector.load %arg0[%c5, %c0_38, %c0_39] : memref<8x8x128xf32, #tpu.memory_space<vmem>>, vector<1x8x128xf32>
    %119 = vector.shape_cast %118 : vector<1x8x128xf32> to vector<8x128xf32>
    %cst_40 = arith.constant dense<0.000000e+00> : vector<8x128xf32>
    %120 = tpu.matmul %117, %0, %cst_40 {dimension_numbers = #tpu.dot_dimension_numbers<[1], [0], [0], [1], [0, 0, 1, 1], [], []>} : vector<8x32xf32>, vector<32x128xf32>, vector<8x128xf32> -> vector<8x128xf32>
    %121 = arith.addf %119, %120 : vector<8x128xf32>
    %cst_41 = arith.constant 0.000000e+00 : f32
    %122 = vector.broadcast %cst_41 : f32 to vector<8x128xf32>
    %123 = arith.subf %122, %121 : vector<8x128xf32>
    %124 = math.exp %123 : vector<8x128xf32>
    %cst_42 = arith.constant 1.000000e+00 : f32
    %125 = vector.broadcast %cst_42 : f32 to vector<8x128xf32>
    %126 = arith.addf %125, %124 : vector<8x128xf32>
    %127 = tpu.reciprocal %126 : vector<8x128xf32> -> vector<8x128xf32>
    %128 = vector.extract_strided_slice %127 {offsets = [0, 0], sizes = [8, 32], strides = [1, 1]} : vector<8x128xf32> to vector<8x32xf32>
    %129 = vector.extract_strided_slice %127 {offsets = [0, 32], sizes = [8, 32], strides = [1, 1]} : vector<8x128xf32> to vector<8x32xf32>
    %130 = vector.extract_strided_slice %127 {offsets = [0, 64], sizes = [8, 32], strides = [1, 1]} : vector<8x128xf32> to vector<8x32xf32>
    %cst_43 = arith.constant 2.000000e+00 : f32
    %131 = vector.broadcast %cst_43 : f32 to vector<8x32xf32>
    %132 = arith.mulf %131, %130 : vector<8x32xf32>
    %cst_44 = arith.constant 1.000000e+00 : f32
    %133 = vector.broadcast %cst_44 : f32 to vector<8x32xf32>
    %134 = arith.subf %132, %133 : vector<8x32xf32>
    %135 = vector.extract_strided_slice %127 {offsets = [0, 96], sizes = [8, 32], strides = [1, 1]} : vector<8x128xf32> to vector<8x32xf32>
    %136 = arith.mulf %129, %115 : vector<8x32xf32>
    %137 = arith.mulf %128, %134 : vector<8x32xf32>
    %138 = arith.addf %136, %137 : vector<8x32xf32>
    %139 = math.tanh %138 : vector<8x32xf32>
    %140 = arith.mulf %135, %139 : vector<8x32xf32>
    %c6 = arith.constant 6 : index
    %c0_45 = arith.constant 0 : index
    %c0_46 = arith.constant 0 : index
    %141 = vector.load %arg0[%c6, %c0_45, %c0_46] : memref<8x8x128xf32, #tpu.memory_space<vmem>>, vector<1x8x128xf32>
    %142 = vector.shape_cast %141 : vector<1x8x128xf32> to vector<8x128xf32>
    %cst_47 = arith.constant dense<0.000000e+00> : vector<8x128xf32>
    %143 = tpu.matmul %140, %0, %cst_47 {dimension_numbers = #tpu.dot_dimension_numbers<[1], [0], [0], [1], [0, 0, 1, 1], [], []>} : vector<8x32xf32>, vector<32x128xf32>, vector<8x128xf32> -> vector<8x128xf32>
    %144 = arith.addf %142, %143 : vector<8x128xf32>
    %cst_48 = arith.constant 0.000000e+00 : f32
    %145 = vector.broadcast %cst_48 : f32 to vector<8x128xf32>
    %146 = arith.subf %145, %144 : vector<8x128xf32>
    %147 = math.exp %146 : vector<8x128xf32>
    %cst_49 = arith.constant 1.000000e+00 : f32
    %148 = vector.broadcast %cst_49 : f32 to vector<8x128xf32>
    %149 = arith.addf %148, %147 : vector<8x128xf32>
    %150 = tpu.reciprocal %149 : vector<8x128xf32> -> vector<8x128xf32>
    %151 = vector.extract_strided_slice %150 {offsets = [0, 0], sizes = [8, 32], strides = [1, 1]} : vector<8x128xf32> to vector<8x32xf32>
    %152 = vector.extract_strided_slice %150 {offsets = [0, 32], sizes = [8, 32], strides = [1, 1]} : vector<8x128xf32> to vector<8x32xf32>
    %153 = vector.extract_strided_slice %150 {offsets = [0, 64], sizes = [8, 32], strides = [1, 1]} : vector<8x128xf32> to vector<8x32xf32>
    %cst_50 = arith.constant 2.000000e+00 : f32
    %154 = vector.broadcast %cst_50 : f32 to vector<8x32xf32>
    %155 = arith.mulf %154, %153 : vector<8x32xf32>
    %cst_51 = arith.constant 1.000000e+00 : f32
    %156 = vector.broadcast %cst_51 : f32 to vector<8x32xf32>
    %157 = arith.subf %155, %156 : vector<8x32xf32>
    %158 = vector.extract_strided_slice %150 {offsets = [0, 96], sizes = [8, 32], strides = [1, 1]} : vector<8x128xf32> to vector<8x32xf32>
    %159 = arith.mulf %152, %138 : vector<8x32xf32>
    %160 = arith.mulf %151, %157 : vector<8x32xf32>
    %161 = arith.addf %159, %160 : vector<8x32xf32>
    %162 = math.tanh %161 : vector<8x32xf32>
    %163 = arith.mulf %158, %162 : vector<8x32xf32>
    %c7 = arith.constant 7 : index
    %c0_52 = arith.constant 0 : index
    %c0_53 = arith.constant 0 : index
    %164 = vector.load %arg0[%c7, %c0_52, %c0_53] : memref<8x8x128xf32, #tpu.memory_space<vmem>>, vector<1x8x128xf32>
    %165 = vector.shape_cast %164 : vector<1x8x128xf32> to vector<8x128xf32>
    %cst_54 = arith.constant dense<0.000000e+00> : vector<8x128xf32>
    %166 = tpu.matmul %163, %0, %cst_54 {dimension_numbers = #tpu.dot_dimension_numbers<[1], [0], [0], [1], [0, 0, 1, 1], [], []>} : vector<8x32xf32>, vector<32x128xf32>, vector<8x128xf32> -> vector<8x128xf32>
    %167 = arith.addf %165, %166 : vector<8x128xf32>
    %cst_55 = arith.constant 0.000000e+00 : f32
    %168 = vector.broadcast %cst_55 : f32 to vector<8x128xf32>
    %169 = arith.subf %168, %167 : vector<8x128xf32>
    %170 = math.exp %169 : vector<8x128xf32>
    %cst_56 = arith.constant 1.000000e+00 : f32
    %171 = vector.broadcast %cst_56 : f32 to vector<8x128xf32>
    %172 = arith.addf %171, %170 : vector<8x128xf32>
    %173 = tpu.reciprocal %172 : vector<8x128xf32> -> vector<8x128xf32>
    %174 = vector.extract_strided_slice %173 {offsets = [0, 0], sizes = [8, 32], strides = [1, 1]} : vector<8x128xf32> to vector<8x32xf32>
    %175 = vector.extract_strided_slice %173 {offsets = [0, 32], sizes = [8, 32], strides = [1, 1]} : vector<8x128xf32> to vector<8x32xf32>
    %176 = vector.extract_strided_slice %173 {offsets = [0, 64], sizes = [8, 32], strides = [1, 1]} : vector<8x128xf32> to vector<8x32xf32>
    %cst_57 = arith.constant 2.000000e+00 : f32
    %177 = vector.broadcast %cst_57 : f32 to vector<8x32xf32>
    %178 = arith.mulf %177, %176 : vector<8x32xf32>
    %cst_58 = arith.constant 1.000000e+00 : f32
    %179 = vector.broadcast %cst_58 : f32 to vector<8x32xf32>
    %180 = arith.subf %178, %179 : vector<8x32xf32>
    %181 = vector.extract_strided_slice %173 {offsets = [0, 96], sizes = [8, 32], strides = [1, 1]} : vector<8x128xf32> to vector<8x32xf32>
    %182 = arith.mulf %175, %161 : vector<8x32xf32>
    %183 = arith.mulf %174, %180 : vector<8x32xf32>
    %184 = arith.addf %182, %183 : vector<8x32xf32>
    %185 = math.tanh %184 : vector<8x32xf32>
    %186 = arith.mulf %181, %185 : vector<8x32xf32>
    %c0_59 = arith.constant 0 : index
    %c0_60 = arith.constant 0 : index
    %187 = vector.load %arg4[%c0_59, %c0_60] : memref<8x32xf32, #tpu.memory_space<vmem>>, vector<8x32xf32>
    tpu.vector_store %arg4[%c0_59, %c0_60], %186 {strides = array<i32>} : memref<8x32xf32, #tpu.memory_space<vmem>>, vector<8x32xf32>,
    %c0_61 = arith.constant 0 : index
    %c0_62 = arith.constant 0 : index
    %188 = vector.load %arg5[%c0_61, %c0_62] : memref<8x32xf32, #tpu.memory_space<vmem>>, vector<8x32xf32>
    tpu.vector_store %arg5[%c0_61, %c0_62], %184 {strides = array<i32>} : memref<8x32xf32, #tpu.memory_space<vmem>>, vector<8x32xf32>,
    %c0_63 = arith.constant 0 : index
    %c0_64 = arith.constant 0 : index
    %189 = vector.load %arg2[%c0_63, %c0_64] : memref<32x128xf32, #tpu.memory_space<vmem>>, vector<32x128xf32>
    %cst_65 = arith.constant dense<0.000000e+00> : vector<8x128xf32>
    %190 = tpu.matmul %186, %189, %cst_65 {dimension_numbers = #tpu.dot_dimension_numbers<[1], [0], [0], [1], [0, 0, 1, 1], [], []>} : vector<8x32xf32>, vector<32x128xf32>, vector<8x128xf32> -> vector<8x128xf32>
    %c0_66 = arith.constant 0 : index
    %c0_67 = arith.constant 0 : index
    %191 = vector.load %arg3[%c0_66, %c0_67] : memref<1x128xf32, #tpu.memory_space<vmem>>, vector<1x128xf32>
    %192 = vector.broadcast %191 : vector<1x128xf32> to vector<8x128xf32>
    %193 = arith.addf %190, %192 : vector<8x128xf32>
    %c0_68 = arith.constant 0 : index
    %c0_69 = arith.constant 0 : index
    %194 = vector.load %arg6[%c0_68, %c0_69] : memref<8x128xf32, #tpu.memory_space<vmem>>, vector<8x128xf32>
    tpu.vector_store %arg6[%c0_68, %c0_69], %193 {strides = array<i32>} : memref<8x128xf32, #tpu.memory_space<vmem>>, vector<8x128xf32>,
    return
  }
}

</mosaic_0001>

<llo_original>
// kernel: tpu_custom_call.1
$region0: #{tpu_custom_call.1}
  #allocation0 [shape = 'u32[]', space=smem, size = 0x4, offset = 0x4, fixed_abs, tag = 'smem constant byte address 0x4 - core index']
  #allocation1 [shape = 'u32[144,128]{1,0:T(1,128)}', space=vmem, size = 0x12000, scoped, tag = 'internal scratch']
  %s0 = inlined_call_operand.hbm [shape: f32[8,8,128], index: 0, kind: input, shape index: {}]
  %s1 = inlined_call_operand.hbm [shape: f32[32,128], index: 1, kind: input, shape index: {}]
  %s2 = inlined_call_operand.hbm [shape: f32[32,128], index: 2, kind: input, shape index: {}]
  %s3 = inlined_call_operand.vmem [shape: f32[1,128], index: 3, kind: input, shape index: {}]
  %s4 = inlined_call_operand.hbm [shape: f32[8,32], index: 4, kind: output, shape index: {0}]
  %s5 = inlined_call_operand.hbm [shape: f32[8,32], index: 5, kind: output, shape index: {1}]
  %s6 = inlined_call_operand.hbm [shape: f32[8,128], index: 6, kind: output, shape index: {2}]
  %7 = xla_tuple %s4, %s5, %s6
  %s8 = sld [smem:[#allocation0]]
  $region54: #{tpu_custom_call.1} parent=0
    _
  %s10 = ssub.s32 1, %s8
  %s11 = scalar_select 0, %s10, %s8
  $region1: #{tpu_custom_call.1} parent=0
    #allocation2 [shape = 'u8[32768]{0}', space=vmem, size = 0x8000, scoped, tag = 'input window, operand 0, single buffered']
    #allocation3 [shape = 's32[1]{0}', space=sflag, size = 0x4, scoped, tag = 'scoped memory for tpu_custom_call.1']
    #allocation4 [shape = 's32[1]{0}', space=sflag, size = 0x4, scoped, tag = 'scoped memory for tpu_custom_call.1']
    #allocation5 [shape = 'u8[16384]{0}', space=vmem, size = 0x4000, scoped, tag = 'input window, operand 1, single buffered']
    #allocation6 [shape = 's32[1]{0}', space=sflag, size = 0x4, scoped, tag = 'scoped memory for tpu_custom_call.1']
    #allocation7 [shape = 'u8[16384]{0}', space=vmem, size = 0x4000, scoped, tag = 'input window, operand 2, single buffered']
    #allocation8 [shape = 'u8[4096]{0}', space=vmem, size = 0x1000, scoped, tag = 'output window, operand 0, single buffered']
    #allocation9 [shape = 'u8[4096]{0}', space=vmem, size = 0x1000, scoped, tag = 'output window, operand 1, single buffered']
    #allocation10 [shape = 's32[1]{0}', space=sflag, size = 0x4, scoped, tag = 'scoped memory for tpu_custom_call.1']
    #allocation11 [shape = 'u8[4096]{0}', space=vmem, size = 0x1000, scoped, tag = 'output window, operand 2, single buffered']
    %12 = vsyncpa [#allocation3], 0
    %13 = vsyncpa [#allocation6], 0
    %14 = vsyncpa [#allocation4], 0
    %15 = vsyncpa [#allocation10], 0
    // Predicated region
    $region2: #{tpu_custom_call.1} parent=1 // pred_check
      _
    $region3: #{tpu_custom_call.1} parent=1 // pred_check_branch
      %17 = sbr.rel (0) target = $region5
    $region4: #{tpu_custom_call.1} parent=1 // pred_region
      %s19 = ssub.s32 1024, 1024
      %20 = vsyncadd [#allocation3], %s19
      %s21 = sshll.u32 [#allocation2], 4
      %s22 = int_to_ptr.vmem [resolvable:$true] %s21
      %27 = dma.hbm_to_vmem [thread:$0]  %s0, 1024, %s22, [#allocation3], 128, 128, 8
    $region5: #{tpu_custom_call.1} parent=1 // pred_fallthru
      _
    // Predicated region
    $region6: #{tpu_custom_call.1} parent=1 // pred_check
      _
    $region7: #{tpu_custom_call.1} parent=1 // pred_check_branch
      %29 = sbr.rel (0) target = $region9
    $region8: #{tpu_custom_call.1} parent=1 // pred_region
      %s31 = ssub.s32 512, 512
      %32 = vsyncadd [#allocation6], %s31
      %s33 = sshll.u32 [#allocation5], 4
      %s34 = int_to_ptr.vmem [resolvable:$true] %s33
      %39 = dma.hbm_to_vmem [thread:$0]  %s1, 512, %s34, [#allocation6], 128, 128, 8
    $region9: #{tpu_custom_call.1} parent=1 // pred_fallthru
      _
    // Predicated region
    $region10: #{tpu_custom_call.1} parent=1 // pred_check
      _
    $region11: #{tpu_custom_call.1} parent=1 // pred_check_branch
      %41 = sbr.rel (0) target = $region13
    $region12: #{tpu_custom_call.1} parent=1 // pred_region
      %s43 = ssub.s32 512, 512
      %44 = vsyncadd [#allocation6], %s43
      %s45 = sshll.u32 [#allocation7], 4
      %s46 = int_to_ptr.vmem [resolvable:$true] %s45
      %51 = dma.hbm_to_vmem [thread:$0]  %s2, 512, %s46, [#allocation6], 128, 128, 8
    $region13: #{tpu_custom_call.1} parent=1 // pred_fallthru
      _
    // Predicated region
    $region14: #{tpu_custom_call.1} parent=1 // pred_check
      _
    $region15: #{tpu_custom_call.1} parent=1 // pred_check_branch
      %53 = sbr.rel (0) target = $region17
    $region16: #{tpu_custom_call.1} parent=1 // pred_region
      _
    $region17: #{tpu_custom_call.1} parent=1 // pred_fallthru
      _
    // Predicated region
    $region18: #{tpu_custom_call.1} parent=1 // pred_check
      _
    $region19: #{tpu_custom_call.1} parent=1 // pred_check_branch
      %55 = sbr.rel (0) target = $region21
    $region20: #{tpu_custom_call.1} parent=1 // pred_region
      %56 = dma.done [#allocation3], 1024
    $region21: #{tpu_custom_call.1} parent=1 // pred_fallthru
      _
    // Predicated region
    $region22: #{tpu_custom_call.1} parent=1 // pred_check
      _
    $region23: #{tpu_custom_call.1} parent=1 // pred_check_branch
      %58 = sbr.rel (0) target = $region25
    $region24: #{tpu_custom_call.1} parent=1 // pred_region
      %59 = dma.done [#allocation6], 512
    $region25: #{tpu_custom_call.1} parent=1 // pred_fallthru
      _
    // Predicated region
    $region26: #{tpu_custom_call.1} parent=1 // pred_check
      _
    $region27: #{tpu_custom_call.1} parent=1 // pred_check_branch
      %61 = sbr.rel (0) target = $region29
    $region28: #{tpu_custom_call.1} parent=1 // pred_region
      %62 = dma.done [#allocation6], 512
    $region29: #{tpu_custom_call.1} parent=1 // pred_fallthru
      _
    %v63 = vld [vmem:[#allocation5] sm:$0xff]
    %v64 = vld [vmem:[#allocation5 + $0x8] sm:$0xff]
    %v65 = vld [vmem:[#allocation5 + $0x10] sm:$0xff]
    %v66 = vld [vmem:[#allocation5 + $0x18] sm:$0xff]
    %v67 = vld [vmem:[#allocation2] sm:$0xff]
    %vm68 = vcmask 261120
    %v70 = vsel %vm68, 0.0, 0
    %72 = vmatprep.subr.mxu0 0.0
    %73 = vmatpush1.msra.mxu0 %v63
    %74 = vmatprep.subr.mxu0 0.0
    %75 = vmatpush1.msra.mxu0 %v64
    %76 = vmatprep.subr.mxu0 0.0
    %77 = vmatpush1.msra.mxu0 %v65
    %78 = vmatprep.subr.mxu0 0.0
    %79 = vmatpush1.msra.mxu0 %v66
    %80 = vmatprep.subr.mxu0 0.0
    %81 = vmatpush1.msra.mxu0 0.0
    %82 = vmatprep.subr.mxu0 0.0
    %83 = vmatpush1.msra.mxu0 0.0
    %84 = vmatprep.subr.mxu0 0.0
    %85 = vmatpush1.msra.mxu0 0.0
    %86 = vmatprep.subr.mxu0 0.0
    %87 = vmatpush1.msra.mxu0 0.0
    %88 = vmatprep.subr.mxu0 0.0
    %89 = vmatpush1.msra.mxu0 0.0
    %90 = vmatprep.subr.mxu0 0.0
    %91 = vmatpush1.msra.mxu0 0.0
    %92 = vmatprep.subr.mxu0 0.0
    %93 = vmatpush1.msra.mxu0 0.0
    %94 = vmatprep.subr.mxu0 0.0
    %95 = vmatpush1.msra.mxu0 0.0
    %96 = vmatprep.subr.mxu0 0.0
    %97 = vmatpush1.msra.mxu0 0.0
    %98 = vmatprep.subr.mxu0 0.0
    %99 = vmatpush1.msra.mxu0 0.0
    %100 = vmatprep.subr.mxu0 0.0
    %101 = vmatpush1.msra.mxu0 0.0
    %102 = vmatprep.subr.mxu0 0.0
    %103 = vmatpush1.msra.mxu0 0.0
    %104 = vmatprep.subr.mxu0 0.0
    %105 = vmatpush1.msra.mxu0 0.0
    %106 = vmatprep.subr.mxu0 0.0
    %107 = vmatpush1.msra.mxu0 0.0
    %108 = vmatprep.subr.mxu0 0.0
    %109 = vmatpush1.msra.mxu0 0.0
    %110 = vmatprep.subr.mxu0 0.0
    %111 = vmatpush1.msra.mxu0 0.0
    %112 = vmatprep.subr.mxu0 0.0
    %113 = vmatpush1.msra.mxu0 0.0
    %114 = vmatprep.subr.mxu0 0.0
    %115 = vmatpush1.msra.mxu0 0.0
    %116 = vmatprep.subr.mxu0 0.0
    %117 = vmatpush1.msra.mxu0 0.0
    %118 = vmatprep.subr.mxu0 0.0
    %119 = vmatpush1.msra.mxu0 0.0
    %120 = vmatprep.subr.mxu0 0.0
    %121 = vmatpush1.msra.mxu0 0.0
    %122 = vmatprep.subr.mxu0 0.0
    %123 = vmatpush1.msra.mxu0 0.0
    %124 = vmatprep.subr.mxu0 0.0
    %125 = vmatpush1.msra.mxu0 0.0
    %126 = vmatprep.subr.mxu0 0.0
    %127 = vmatpush1.msra.mxu0 0.0
    %128 = vmatprep.subr.mxu0 0.0
    %129 = vmatpush1.msra.mxu0 0.0
    %130 = vmatprep.subr.mxu0 0.0
    %131 = vmatpush1.msra.mxu0 0.0
    %132 = vmatprep.subr.mxu0 0.0
    %133 = vmatpush1.msra.mxu0 0.0
    %134 = vmatprep.subr.mxu0 0.0
    %135 = vmatpush1.msra.mxu0 0.0
    %136 = vmatprep.mubr.f32.mxu0 0.0
    %137 = vmatmul.mubr.f32.gmra.mrb[0].mxu0 %v70
    %v138 = vpop.f32.mrb[0].mxu0
    %v139 = vadd.f32 0.0, %v138
    %v140 = vpop.f32.mrb[0].mxu0
    %141 = vdwg.mxu0
    %v142 = vadd.f32 %v67, %v139
    %v143 = vsub.f32 0.0, %v142
    %v144 = vmul.f32 %v143, 1.442695
    %v145 = vpow.pop %v144
    %v146 = vadd.f32 %v145, 1.0
    %v147 = vrcp.pop %v146
    %v148 = vmul.f32 %v147, 2.0
    %v149 = vsub.f32 %v148, 1.0
    %v150 = vmul.f32 %v147, 0.0
    %152 = vrot.lane.b32.xlu0 %v149, 64
    %v153 = vpop.permute.xlu0 %152
    %v155 = vmul.f32 %v147, %v153
    %157 = vrot.lane.b32.xlu0 %v155, 32
    %v158 = vpop.permute.xlu0 %157
    %v160 = vadd.f32 %v150, %v158
    %v161 = vtanh.pop %v160
    %163 = vrot.lane.b32.xlu0 %v161, 64
    %v164 = vpop.permute.xlu0 %163
    %v166 = vmul.f32 %v147, %v164
    %s167 = scalar_lea.vmem [#allocation2], 8
    %v168 = vld [vmem:[%s167] sm:$0xff]
    %170 = vrot.lane.b32.xlu0 %v166, 32
    %v171 = vpop.permute.xlu0 %170
    %v172 = vsel %vm68, %v171, 0
    %174 = vmatprep.subr.mxu0 0.0
    %175 = vmatpush1.msra.mxu0 %v63
    %176 = vmatprep.subr.mxu0 0.0
    %177 = vmatpush1.msra.mxu0 %v64
    %178 = vmatprep.subr.mxu0 0.0
    %179 = vmatpush1.msra.mxu0 %v65
    %180 = vmatprep.subr.mxu0 0.0
    %181 = vmatpush1.msra.mxu0 %v66
    %182 = vmatprep.subr.mxu0 0.0
    %183 = vmatpush1.msra.mxu0 0.0
    %184 = vmatprep.subr.mxu0 0.0
    %185 = vmatpush1.msra.mxu0 0.0
    %186 = vmatprep.subr.mxu0 0.0
    %187 = vmatpush1.msra.mxu0 0.0
    %188 = vmatprep.subr.mxu0 0.0
    %189 = vmatpush1.msra.mxu0 0.0
    %190 = vmatprep.subr.mxu0 0.0
    %191 = vmatpush1.msra.mxu0 0.0
    %192 = vmatprep.subr.mxu0 0.0
    %193 = vmatpush1.msra.mxu0 0.0
    %194 = vmatprep.subr.mxu0 0.0
    %195 = vmatpush1.msra.mxu0 0.0
    %196 = vmatprep.subr.mxu0 0.0
    %197 = vmatpush1.msra.mxu0 0.0
    %198 = vmatprep.subr.mxu0 0.0
    %199 = vmatpush1.msra.mxu0 0.0
    %200 = vmatprep.subr.mxu0 0.0
    %201 = vmatpush1.msra.mxu0 0.0
    %202 = vmatprep.subr.mxu0 0.0
    %203 = vmatpush1.msra.mxu0 0.0
    %204 = vmatprep.subr.mxu0 0.0
    %205 = vmatpush1.msra.mxu0 0.0
    %206 = vmatprep.subr.mxu0 0.0
    %207 = vmatpush1.msra.mxu0 0.0
    %208 = vmatprep.subr.mxu0 0.0
    %209 = vmatpush1.msra.mxu0 0.0
    %210 = vmatprep.subr.mxu0 0.0
    %211 = vmatpush1.msra.mxu0 0.0
    %212 = vmatprep.subr.mxu0 0.0
    %213 = vmatpush1.msra.mxu0 0.0
    %214 = vmatprep.subr.mxu0 0.0
    %215 = vmatpush1.msra.mxu0 0.0
    %216 = vmatprep.subr.mxu0 0.0
    %217 = vmatpush1.msra.mxu0 0.0
    %218 = vmatprep.subr.mxu0 0.0
    %219 = vmatpush1.msra.mxu0 0.0
    %220 = vmatprep.subr.mxu0 0.0
    %221 = vmatpush1.msra.mxu0 0.0
    %222 = vmatprep.subr.mxu0 0.0
    %223 = vmatpush1.msra.mxu0 0.0
    %224 = vmatprep.subr.mxu0 0.0
    %225 = vmatpush1.msra.mxu0 0.0
    %226 = vmatprep.subr.mxu0 0.0
    %227 = vmatpush1.msra.mxu0 0.0
    %228 = vmatprep.subr.mxu0 0.0
    %229 = vmatpush1.msra.mxu0 0.0
    %230 = vmatprep.subr.mxu0 0.0
    %231 = vmatpush1.msra.mxu0 0.0
    %232 = vmatprep.subr.mxu0 0.0
    %233 = vmatpush1.msra.mxu0 0.0
    %234 = vmatprep.subr.mxu0 0.0
    %235 = vmatpush1.msra.mxu0 0.0
    %236 = vmatprep.subr.mxu0 0.0
    %237 = vmatpush1.msra.mxu0 0.0
    %238 = vmatprep.mubr.f32.mxu0 0.0
    %239 = vmatmul.mubr.f32.gmra.mrb[0].mxu0 %v172
    %v240 = vpop.f32.mrb[0].mxu0
    %v241 = vadd.f32 0.0, %v240
    %v242 = vpop.f32.mrb[0].mxu0
    %243 = vdwg.mxu0
    %v244 = vadd.f32 %v168, %v241
    %v245 = vsub.f32 0.0, %v244
    %v246 = vmul.f32 %v245, 1.442695
    %v247 = vpow.pop %v246
    %v248 = vadd.f32 %v247, 1.0
    %v249 = vrcp.pop %v248
    %v250 = vmul.f32 %v249, 2.0
    %v251 = vsub.f32 %v250, 1.0
    %v252 = vmul.f32 %v249, %v160
    %254 = vrot.lane.b32.xlu0 %v251, 64
    %v255 = vpop.permute.xlu0 %254
    %v257 = vmul.f32 %v249, %v255
    %259 = vrot.lane.b32.xlu0 %v257, 32
    %v260 = vpop.permute.xlu0 %259
    %v262 = vadd.f32 %v252, %v260
    %v263 = vtanh.pop %v262
    %265 = vrot.lane.b32.xlu0 %v263, 64
    %v266 = vpop.permute.xlu0 %265
    %v268 = vmul.f32 %v249, %v266
    %s269 = scalar_lea.vmem [#allocation2], 16
    %v270 = vld [vmem:[%s269] sm:$0xff]
    %272 = vrot.lane.b32.xlu0 %v268, 32
    %v273 = vpop.permute.xlu0 %272
    %v274 = vsel %vm68, %v273, 0
    %276 = vmatprep.subr.mxu0 0.0
    %277 = vmatpush1.msra.mxu0 %v63
    %278 = vmatprep.subr.mxu0 0.0
    %279 = vmatpush1.msra.mxu0 %v64
    %280 = vmatprep.subr.mxu0 0.0
    %281 = vmatpush1.msra.mxu0 %v65
    %282 = vmatprep.subr.mxu0 0.0
    %283 = vmatpush1.msra.mxu0 %v66
    %284 = vmatprep.subr.mxu0 0.0
    %285 = vmatpush1.msra.mxu0 0.0
    %286 = vmatprep.subr.mxu0 0.0
    %287 = vmatpush1.msra.mxu0 0.0
    %288 = vmatprep.subr.mxu0 0.0
    %289 = vmatpush1.msra.mxu0 0.0
    %290 = vmatprep.subr.mxu0 0.0
    %291 = vmatpush1.msra.mxu0 0.0
    %292 = vmatprep.subr.mxu0 0.0
    %293 = vmatpush1.msra.mxu0 0.0
    %294 = vmatprep.subr.mxu0 0.0
    %295 = vmatpush1.msra.mxu0 0.0
    %296 = vmatprep.subr.mxu0 0.0
    %297 = vmatpush1.msra.mxu0 0.0
    %298 = vmatprep.subr.mxu0 0.0
    %299 = vmatpush1.msra.mxu0 0.0
    %300 = vmatprep.subr.mxu0 0.0
    %301 = vmatpush1.msra.mxu0 0.0
    %302 = vmatprep.subr.mxu0 0.0
    %303 = vmatpush1.msra.mxu0 0.0
    %304 = vmatprep.subr.mxu0 0.0
    %305 = vmatpush1.msra.mxu0 0.0
    %306 = vmatprep.subr.mxu0 0.0
    %307 = vmatpush1.msra.mxu0 0.0
    %308 = vmatprep.subr.mxu0 0.0
    %309 = vmatpush1.msra.mxu0 0.0
    %310 = vmatprep.subr.mxu0 0.0
    %311 = vmatpush1.msra.mxu0 0.0
    %312 = vmatprep.subr.mxu0 0.0
    %313 = vmatpush1.msra.mxu0 0.0
    %314 = vmatprep.subr.mxu0 0.0
    %315 = vmatpush1.msra.mxu0 0.0
    %316 = vmatprep.subr.mxu0 0.0
    %317 = vmatpush1.msra.mxu0 0.0
    %318 = vmatprep.subr.mxu0 0.0
    %319 = vmatpush1.msra.mxu0 0.0
    %320 = vmatprep.subr.mxu0 0.0
    %321 = vmatpush1.msra.mxu0 0.0
    %322 = vmatprep.subr.mxu0 0.0
    %323 = vmatpush1.msra.mxu0 0.0
    %324 = vmatprep.subr.mxu0 0.0
    %325 = vmatpush1.msra.mxu0 0.0
    %326 = vmatprep.subr.mxu0 0.0
    %327 = vmatpush1.msra.mxu0 0.0
    %328 = vmatprep.subr.mxu0 0.0
    %329 = vmatpush1.msra.mxu0 0.0
    %330 = vmatprep.subr.mxu0 0.0
    %331 = vmatpush1.msra.mxu0 0.0
    %332 = vmatprep.subr.mxu0 0.0
    %333 = vmatpush1.msra.mxu0 0.0
    %334 = vmatprep.subr.mxu0 0.0
    %335 = vmatpush1.msra.mxu0 0.0
    %336 = vmatprep.subr.mxu0 0.0
    %337 = vmatpush1.msra.mxu0 0.0
    %338 = vmatprep.subr.mxu0 0.0
    %339 = vmatpush1.msra.mxu0 0.0
    %340 = vmatprep.mubr.f32.mxu0 0.0
    %341 = vmatmul.mubr.f32.gmra.mrb[0].mxu0 %v274
    %v342 = vpop.f32.mrb[0].mxu0
    %v343 = vadd.f32 0.0, %v342
    %v344 = vpop.f32.mrb[0].mxu0
    %345 = vdwg.mxu0
    %v346 = vadd.f32 %v270, %v343
    %v347 = vsub.f32 0.0, %v346
    %v348 = vmul.f32 %v347, 1.442695
    %v349 = vpow.pop %v348
    %v350 = vadd.f32 %v349, 1.0
    %v351 = vrcp.pop %v350
    %v352 = vmul.f32 %v351, 2.0
    %v353 = vsub.f32 %v352, 1.0
    %v354 = vmul.f32 %v351, %v262
    %356 = vrot.lane.b32.xlu0 %v353, 64
    %v357 = vpop.permute.xlu0 %356
    %v359 = vmul.f32 %v351, %v357
    %361 = vrot.lane.b32.xlu0 %v359, 32
    %v362 = vpop.permute.xlu0 %361
    %v364 = vadd.f32 %v354, %v362
    %v365 = vtanh.pop %v364
    %367 = vrot.lane.b32.xlu0 %v365, 64
    %v368 = vpop.permute.xlu0 %367
    %v370 = vmul.f32 %v351, %v368
    %s371 = scalar_lea.vmem [#allocation2], 24
    %v372 = vld [vmem:[%s371] sm:$0xff]
    %374 = vrot.lane.b32.xlu0 %v370, 32
    %v375 = vpop.permute.xlu0 %374
    %v376 = vsel %vm68, %v375, 0
    %378 = vmatprep.subr.mxu0 0.0
    %379 = vmatpush1.msra.mxu0 %v63
    %380 = vmatprep.subr.mxu0 0.0
    %381 = vmatpush1.msra.mxu0 %v64
    %382 = vmatprep.subr.mxu0 0.0
    %383 = vmatpush1.msra.mxu0 %v65
    %384 = vmatprep.subr.mxu0 0.0
    %385 = vmatpush1.msra.mxu0 %v66
    %386 = vmatprep.subr.mxu0 0.0
    %387 = vmatpush1.msra.mxu0 0.0
    %388 = vmatprep.subr.mxu0 0.0
    %389 = vmatpush1.msra.mxu0 0.0
    %390 = vmatprep.subr.mxu0 0.0
    %391 = vmatpush1.msra.mxu0 0.0
    %392 = vmatprep.subr.mxu0 0.0
    %393 = vmatpush1.msra.mxu0 0.0
    %394 = vmatprep.subr.mxu0 0.0
    %395 = vmatpush1.msra.mxu0 0.0
    %396 = vmatprep.subr.mxu0 0.0
    %397 = vmatpush1.msra.mxu0 0.0
    %398 = vmatprep.subr.mxu0 0.0
    %399 = vmatpush1.msra.mxu0 0.0
    %400 = vmatprep.subr.mxu0 0.0
    %401 = vmatpush1.msra.mxu0 0.0
    %402 = vmatprep.subr.mxu0 0.0
    %403 = vmatpush1.msra.mxu0 0.0
    %404 = vmatprep.subr.mxu0 0.0
    %405 = vmatpush1.msra.mxu0 0.0
    %406 = vmatprep.subr.mxu0 0.0
    %407 = vmatpush1.msra.mxu0 0.0
    %408 = vmatprep.subr.mxu0 0.0
    %409 = vmatpush1.msra.mxu0 0.0
    %410 = vmatprep.subr.mxu0 0.0
    %411 = vmatpush1.msra.mxu0 0.0
    %412 = vmatprep.subr.mxu0 0.0
    %413 = vmatpush1.msra.mxu0 0.0
    %414 = vmatprep.subr.mxu0 0.0
    %415 = vmatpush1.msra.mxu0 0.0
    %416 = vmatprep.subr.mxu0 0.0
    %417 = vmatpush1.msra.mxu0 0.0
    %418 = vmatprep.subr.mxu0 0.0
    %419 = vmatpush1.msra.mxu0 0.0
    %420 = vmatprep.subr.mxu0 0.0
    %421 = vmatpush1.msra.mxu0 0.0
    %422 = vmatprep.subr.mxu0 0.0
    %423 = vmatpush1.msra.mxu0 0.0
    %424 = vmatprep.subr.mxu0 0.0
    %425 = vmatpush1.msra.mxu0 0.0
    %426 = vmatprep.subr.mxu0 0.0
    %427 = vmatpush1.msra.mxu0 0.0
    %428 = vmatprep.subr.mxu0 0.0
    %429 = vmatpush1.msra.mxu0 0.0
    %430 = vmatprep.subr.mxu0 0.0
    %431 = vmatpush1.msra.mxu0 0.0
    %432 = vmatprep.subr.mxu0 0.0
    %433 = vmatpush1.msra.mxu0 0.0
    %434 = vmatprep.subr.mxu0 0.0
    %435 = vmatpush1.msra.mxu0 0.0
    %436 = vmatprep.subr.mxu0 0.0
    %437 = vmatpush1.msra.mxu0 0.0
    %438 = vmatprep.subr.mxu0 0.0
    %439 = vmatpush1.msra.mxu0 0.0
    %440 = vmatprep.subr.mxu0 0.0
    %441 = vmatpush1.msra.mxu0 0.0
    %442 = vmatprep.mubr.f32.mxu0 0.0
    %443 = vmatmul.mubr.f32.gmra.mrb[0].mxu0 %v376
    %v444 = vpop.f32.mrb[0].mxu0
    %v445 = vadd.f32 0.0, %v444
    %v446 = vpop.f32.mrb[0].mxu0
    %447 = vdwg.mxu0
    %v448 = vadd.f32 %v372, %v445
    %v449 = vsub.f32 0.0, %v448
    %v450 = vmul.f32 %v449, 1.442695
    %v451 = vpow.pop %v450
    %v452 = vadd.f32 %v451, 1.0
    %v453 = vrcp.pop %v452
    %v454 = vmul.f32 %v453, 2.0
    %v455 = vsub.f32 %v454, 1.0
    %v456 = vmul.f32 %v453, %v364
    %458 = vrot.lane.b32.xlu0 %v455, 64
    %v459 = vpop.permute.xlu0 %458
    %v461 = vmul.f32 %v453, %v459
    %463 = vrot.lane.b32.xlu0 %v461, 32
    %v464 = vpop.permute.xlu0 %463
    %v466 = vadd.f32 %v456, %v464
    %v467 = vtanh.pop %v466
    %469 = vrot.lane.b32.xlu0 %v467, 64
    %v470 = vpop.permute.xlu0 %469
    %v472 = vmul.f32 %v453, %v470
    %s473 = scalar_lea.vmem [#allocation2], 32
    %v474 = vld [vmem:[%s473] sm:$0xff]
    %476 = vrot.lane.b32.xlu0 %v472, 32
    %v477 = vpop.permute.xlu0 %476
    %v478 = vsel %vm68, %v477, 0
    %480 = vmatprep.subr.mxu0 0.0
    %481 = vmatpush1.msra.mxu0 %v63
    %482 = vmatprep.subr.mxu0 0.0
    %483 = vmatpush1.msra.mxu0 %v64
    %484 = vmatprep.subr.mxu0 0.0
    %485 = vmatpush1.msra.mxu0 %v65
    %486 = vmatprep.subr.mxu0 0.0
    %487 = vmatpush1.msra.mxu0 %v66
    %488 = vmatprep.subr.mxu0 0.0
    %489 = vmatpush1.msra.mxu0 0.0
    %490 = vmatprep.subr.mxu0 0.0
    %491 = vmatpush1.msra.mxu0 0.0
    %492 = vmatprep.subr.mxu0 0.0
    %493 = vmatpush1.msra.mxu0 0.0
    %494 = vmatprep.subr.mxu0 0.0
    %495 = vmatpush1.msra.mxu0 0.0
    %496 = vmatprep.subr.mxu0 0.0
    %497 = vmatpush1.msra.mxu0 0.0
    %498 = vmatprep.subr.mxu0 0.0
    %499 = vmatpush1.msra.mxu0 0.0
    %500 = vmatprep.subr.mxu0 0.0
    %501 = vmatpush1.msra.mxu0 0.0
    %502 = vmatprep.subr.mxu0 0.0
    %503 = vmatpush1.msra.mxu0 0.0
    %504 = vmatprep.subr.mxu0 0.0
    %505 = vmatpush1.msra.mxu0 0.0
    %506 = vmatprep.subr.mxu0 0.0
    %507 = vmatpush1.msra.mxu0 0.0
    %508 = vmatprep.subr.mxu0 0.0
    %509 = vmatpush1.msra.mxu0 0.0
    %510 = vmatprep.subr.mxu0 0.0
    %511 = vmatpush1.msra.mxu0 0.0
    %512 = vmatprep.subr.mxu0 0.0
    %513 = vmatpush1.msra.mxu0 0.0
    %514 = vmatprep.subr.mxu0 0.0
    %515 = vmatpush1.msra.mxu0 0.0
    %516 = vmatprep.subr.mxu0 0.0
    %517 = vmatpush1.msra.mxu0 0.0
    %518 = vmatprep.subr.mxu0 0.0
    %519 = vmatpush1.msra.mxu0 0.0
    %520 = vmatprep.subr.mxu0 0.0
    %521 = vmatpush1.msra.mxu0 0.0
    %522 = vmatprep.subr.mxu0 0.0
    %523 = vmatpush1.msra.mxu0 0.0
    %524 = vmatprep.subr.mxu0 0.0
    %525 = vmatpush1.msra.mxu0 0.0
    %526 = vmatprep.subr.mxu0 0.0
    %527 = vmatpush1.msra.mxu0 0.0
    %528 = vmatprep.subr.mxu0 0.0
    %529 = vmatpush1.msra.mxu0 0.0
    %530 = vmatprep.subr.mxu0 0.0
    %531 = vmatpush1.msra.mxu0 0.0
    %532 = vmatprep.subr.mxu0 0.0
    %533 = vmatpush1.msra.mxu0 0.0
    %534 = vmatprep.subr.mxu0 0.0
    %535 = vmatpush1.msra.mxu0 0.0
    %536 = vmatprep.subr.mxu0 0.0
    %537 = vmatpush1.msra.mxu0 0.0
    %538 = vmatprep.subr.mxu0 0.0
    %539 = vmatpush1.msra.mxu0 0.0
    %540 = vmatprep.subr.mxu0 0.0
    %541 = vmatpush1.msra.mxu0 0.0
    %542 = vmatprep.subr.mxu0 0.0
    %543 = vmatpush1.msra.mxu0 0.0
    %544 = vmatprep.mubr.f32.mxu0 0.0
    %545 = vmatmul.mubr.f32.gmra.mrb[0].mxu0 %v478
    %v546 = vpop.f32.mrb[0].mxu0
    %v547 = vadd.f32 0.0, %v546
    %v548 = vpop.f32.mrb[0].mxu0
    %549 = vdwg.mxu0
    %v550 = vadd.f32 %v474, %v547
    %v551 = vsub.f32 0.0, %v550
    %v552 = vmul.f32 %v551, 1.442695
    %v553 = vpow.pop %v552
    %v554 = vadd.f32 %v553, 1.0
    %v555 = vrcp.pop %v554
    %v556 = vmul.f32 %v555, 2.0
    %v557 = vsub.f32 %v556, 1.0
    %v558 = vmul.f32 %v555, %v466
    %560 = vrot.lane.b32.xlu0 %v557, 64
    %v561 = vpop.permute.xlu0 %560
    %v563 = vmul.f32 %v555, %v561
    %565 = vrot.lane.b32.xlu0 %v563, 32
    %v566 = vpop.permute.xlu0 %565
    %v568 = vadd.f32 %v558, %v566
    %v569 = vtanh.pop %v568
    %571 = vrot.lane.b32.xlu0 %v569, 64
    %v572 = vpop.permute.xlu0 %571
    %v574 = vmul.f32 %v555, %v572
    %s575 = scalar_lea.vmem [#allocation2], 40
    %v576 = vld [vmem:[%s575] sm:$0xff]
    %578 = vrot.lane.b32.xlu0 %v574, 32
    %v579 = vpop.permute.xlu0 %578
    %v580 = vsel %vm68, %v579, 0
    %582 = vmatprep.subr.mxu0 0.0
    %583 = vmatpush1.msra.mxu0 %v63
    %584 = vmatprep.subr.mxu0 0.0
    %585 = vmatpush1.msra.mxu0 %v64
    %586 = vmatprep.subr.mxu0 0.0
    %587 = vmatpush1.msra.mxu0 %v65
    %588 = vmatprep.subr.mxu0 0.0
    %589 = vmatpush1.msra.mxu0 %v66
    %590 = vmatprep.subr.mxu0 0.0
    %591 = vmatpush1.msra.mxu0 0.0
    %592 = vmatprep.subr.mxu0 0.0
    %593 = vmatpush1.msra.mxu0 0.0
    %594 = vmatprep.subr.mxu0 0.0
    %595 = vmatpush1.msra.mxu0 0.0
    %596 = vmatprep.subr.mxu0 0.0
    %597 = vmatpush1.msra.mxu0 0.0
    %598 = vmatprep.subr.mxu0 0.0
    %599 = vmatpush1.msra.mxu0 0.0
    %600 = vmatprep.subr.mxu0 0.0
    %601 = vmatpush1.msra.mxu0 0.0
    %602 = vmatprep.subr.mxu0 0.0
    %603 = vmatpush1.msra.mxu0 0.0
    %604 = vmatprep.subr.mxu0 0.0
    %605 = vmatpush1.msra.mxu0 0.0
    %606 = vmatprep.subr.mxu0 0.0
    %607 = vmatpush1.msra.mxu0 0.0
    %608 = vmatprep.subr.mxu0 0.0
    %609 = vmatpush1.msra.mxu0 0.0
    %610 = vmatprep.subr.mxu0 0.0
    %611 = vmatpush1.msra.mxu0 0.0
    %612 = vmatprep.subr.mxu0 0.0
    %613 = vmatpush1.msra.mxu0 0.0
    %614 = vmatprep.subr.mxu0 0.0
    %615 = vmatpush1.msra.mxu0 0.0
    %616 = vmatprep.subr.mxu0 0.0
    %617 = vmatpush1.msra.mxu0 0.0
    %618 = vmatprep.subr.mxu0 0.0
    %619 = vmatpush1.msra.mxu0 0.0
    %620 = vmatprep.subr.mxu0 0.0
    %621 = vmatpush1.msra.mxu0 0.0
    %622 = vmatprep.subr.mxu0 0.0
    %623 = vmatpush1.msra.mxu0 0.0
    %624 = vmatprep.subr.mxu0 0.0
    %625 = vmatpush1.msra.mxu0 0.0
    %626 = vmatprep.subr.mxu0 0.0
    %627 = vmatpush1.msra.mxu0 0.0
    %628 = vmatprep.subr.mxu0 0.0
    %629 = vmatpush1.msra.mxu0 0.0
    %630 = vmatprep.subr.mxu0 0.0
    %631 = vmatpush1.msra.mxu0 0.0
    %632 = vmatprep.subr.mxu0 0.0
    %633 = vmatpush1.msra.mxu0 0.0
    %634 = vmatprep.subr.mxu0 0.0
    %635 = vmatpush1.msra.mxu0 0.0
    %636 = vmatprep.subr.mxu0 0.0
    %637 = vmatpush1.msra.mxu0 0.0
    %638 = vmatprep.subr.mxu0 0.0
    %639 = vmatpush1.msra.mxu0 0.0
    %640 = vmatprep.subr.mxu0 0.0
    %641 = vmatpush1.msra.mxu0 0.0
    %642 = vmatprep.subr.mxu0 0.0
    %643 = vmatpush1.msra.mxu0 0.0
    %644 = vmatprep.subr.mxu0 0.0
    %645 = vmatpush1.msra.mxu0 0.0
    %646 = vmatprep.mubr.f32.mxu0 0.0
    %647 = vmatmul.mubr.f32.gmra.mrb[0].mxu0 %v580
    %v648 = vpop.f32.mrb[0].mxu0
    %v649 = vadd.f32 0.0, %v648
    %v650 = vpop.f32.mrb[0].mxu0
    %651 = vdwg.mxu0
    %v652 = vadd.f32 %v576, %v649
    %v653 = vsub.f32 0.0, %v652
    %v654 = vmul.f32 %v653, 1.442695
    %v655 = vpow.pop %v654
    %v656 = vadd.f32 %v655, 1.0
    %v657 = vrcp.pop %v656
    %v658 = vmul.f32 %v657, 2.0
    %v659 = vsub.f32 %v658, 1.0
    %v660 = vmul.f32 %v657, %v568
    %662 = vrot.lane.b32.xlu0 %v659, 64
    %v663 = vpop.permute.xlu0 %662
    %v665 = vmul.f32 %v657, %v663
    %667 = vrot.lane.b32.xlu0 %v665, 32
    %v668 = vpop.permute.xlu0 %667
    %v670 = vadd.f32 %v660, %v668
    %v671 = vtanh.pop %v670
    %673 = vrot.lane.b32.xlu0 %v671, 64
    %v674 = vpop.permute.xlu0 %673
    %v676 = vmul.f32 %v657, %v674
    %s677 = scalar_lea.vmem [#allocation2], 48
    %v678 = vld [vmem:[%s677] sm:$0xff]
    %680 = vrot.lane.b32.xlu0 %v676, 32
    %v681 = vpop.permute.xlu0 %680
    %v682 = vsel %vm68, %v681, 0
    %684 = vmatprep.subr.mxu0 0.0
    %685 = vmatpush1.msra.mxu0 %v63
    %686 = vmatprep.subr.mxu0 0.0
    %687 = vmatpush1.msra.mxu0 %v64
    %688 = vmatprep.subr.mxu0 0.0
    %689 = vmatpush1.msra.mxu0 %v65
    %690 = vmatprep.subr.mxu0 0.0
    %691 = vmatpush1.msra.mxu0 %v66
    %692 = vmatprep.subr.mxu0 0.0
    %693 = vmatpush1.msra.mxu0 0.0
    %694 = vmatprep.subr.mxu0 0.0
    %695 = vmatpush1.msra.mxu0 0.0
    %696 = vmatprep.subr.mxu0 0.0
    %697 = vmatpush1.msra.mxu0 0.0
    %698 = vmatprep.subr.mxu0 0.0
    %699 = vmatpush1.msra.mxu0 0.0
    %700 = vmatprep.subr.mxu0 0.0
    %701 = vmatpush1.msra.mxu0 0.0
    %702 = vmatprep.subr.mxu0 0.0
    %703 = vmatpush1.msra.mxu0 0.0
    %704 = vmatprep.subr.mxu0 0.0
    %705 = vmatpush1.msra.mxu0 0.0
    %706 = vmatprep.subr.mxu0 0.0
    %707 = vmatpush1.msra.mxu0 0.0
    %708 = vmatprep.subr.mxu0 0.0
    %709 = vmatpush1.msra.mxu0 0.0
    %710 = vmatprep.subr.mxu0 0.0
    %711 = vmatpush1.msra.mxu0 0.0
    %712 = vmatprep.subr.mxu0 0.0
    %713 = vmatpush1.msra.mxu0 0.0
    %714 = vmatprep.subr.mxu0 0.0
    %715 = vmatpush1.msra.mxu0 0.0
    %716 = vmatprep.subr.mxu0 0.0
    %717 = vmatpush1.msra.mxu0 0.0
    %718 = vmatprep.subr.mxu0 0.0
    %719 = vmatpush1.msra.mxu0 0.0
    %720 = vmatprep.subr.mxu0 0.0
    %721 = vmatpush1.msra.mxu0 0.0
    %722 = vmatprep.subr.mxu0 0.0
    %723 = vmatpush1.msra.mxu0 0.0
    %724 = vmatprep.subr.mxu0 0.0
    %725 = vmatpush1.msra.mxu0 0.0
    %726 = vmatprep.subr.mxu0 0.0
    %727 = vmatpush1.msra.mxu0 0.0
    %728 = vmatprep.subr.mxu0 0.0
    %729 = vmatpush1.msra.mxu0 0.0
    %730 = vmatprep.subr.mxu0 0.0
    %731 = vmatpush1.msra.mxu0 0.0
    %732 = vmatprep.subr.mxu0 0.0
    %733 = vmatpush1.msra.mxu0 0.0
    %734 = vmatprep.subr.mxu0 0.0
    %735 = vmatpush1.msra.mxu0 0.0
    %736 = vmatprep.subr.mxu0 0.0
    %737 = vmatpush1.msra.mxu0 0.0
    %738 = vmatprep.subr.mxu0 0.0
    %739 = vmatpush1.msra.mxu0 0.0
    %740 = vmatprep.subr.mxu0 0.0
    %741 = vmatpush1.msra.mxu0 0.0
    %742 = vmatprep.subr.mxu0 0.0
    %743 = vmatpush1.msra.mxu0 0.0
    %744 = vmatprep.subr.mxu0 0.0
    %745 = vmatpush1.msra.mxu0 0.0
    %746 = vmatprep.subr.mxu0 0.0
    %747 = vmatpush1.msra.mxu0 0.0
    %748 = vmatprep.mubr.f32.mxu0 0.0
    %749 = vmatmul.mubr.f32.gmra.mrb[0].mxu0 %v682
    %v750 = vpop.f32.mrb[0].mxu0
    %v751 = vadd.f32 0.0, %v750
    %v752 = vpop.f32.mrb[0].mxu0
    %753 = vdwg.mxu0
    %v754 = vadd.f32 %v678, %v751
    %v755 = vsub.f32 0.0, %v754
    %v756 = vmul.f32 %v755, 1.442695
    %v757 = vpow.pop %v756
    %v758 = vadd.f32 %v757, 1.0
    %v759 = vrcp.pop %v758
    %v760 = vmul.f32 %v759, 2.0
    %v761 = vsub.f32 %v760, 1.0
    %v762 = vmul.f32 %v759, %v670
    %764 = vrot.lane.b32.xlu0 %v761, 64
    %v765 = vpop.permute.xlu0 %764
    %v767 = vmul.f32 %v759, %v765
    %769 = vrot.lane.b32.xlu0 %v767, 32
    %v770 = vpop.permute.xlu0 %769
    %v772 = vadd.f32 %v762, %v770
    %v773 = vtanh.pop %v772
    %775 = vrot.lane.b32.xlu0 %v773, 64
    %v776 = vpop.permute.xlu0 %775
    %v778 = vmul.f32 %v759, %v776
    %s779 = scalar_lea.vmem [#allocation2], 56
    %v780 = vld [vmem:[%s779] sm:$0xff]
    %782 = vrot.lane.b32.xlu0 %v778, 32
    %v783 = vpop.permute.xlu0 %782
    %v784 = vsel %vm68, %v783, 0
    %786 = vmatprep.subr.mxu0 0.0
    %787 = vmatpush1.msra.mxu0 %v63
    %788 = vmatprep.subr.mxu0 0.0
    %789 = vmatpush1.msra.mxu0 %v64
    %790 = vmatprep.subr.mxu0 0.0
    %791 = vmatpush1.msra.mxu0 %v65
    %792 = vmatprep.subr.mxu0 0.0
    %793 = vmatpush1.msra.mxu0 %v66
    %794 = vmatprep.subr.mxu0 0.0
    %795 = vmatpush1.msra.mxu0 0.0
    %796 = vmatprep.subr.mxu0 0.0
    %797 = vmatpush1.msra.mxu0 0.0
    %798 = vmatprep.subr.mxu0 0.0
    %799 = vmatpush1.msra.mxu0 0.0
    %800 = vmatprep.subr.mxu0 0.0
    %801 = vmatpush1.msra.mxu0 0.0
    %802 = vmatprep.subr.mxu0 0.0
    %803 = vmatpush1.msra.mxu0 0.0
    %804 = vmatprep.subr.mxu0 0.0
    %805 = vmatpush1.msra.mxu0 0.0
    %806 = vmatprep.subr.mxu0 0.0
    %807 = vmatpush1.msra.mxu0 0.0
    %808 = vmatprep.subr.mxu0 0.0
    %809 = vmatpush1.msra.mxu0 0.0
    %810 = vmatprep.subr.mxu0 0.0
    %811 = vmatpush1.msra.mxu0 0.0
    %812 = vmatprep.subr.mxu0 0.0
    %813 = vmatpush1.msra.mxu0 0.0
    %814 = vmatprep.subr.mxu0 0.0
    %815 = vmatpush1.msra.mxu0 0.0
    %816 = vmatprep.subr.mxu0 0.0
    %817 = vmatpush1.msra.mxu0 0.0
    %818 = vmatprep.subr.mxu0 0.0
    %819 = vmatpush1.msra.mxu0 0.0
    %820 = vmatprep.subr.mxu0 0.0
    %821 = vmatpush1.msra.mxu0 0.0
    %822 = vmatprep.subr.mxu0 0.0
    %823 = vmatpush1.msra.mxu0 0.0
    %824 = vmatprep.subr.mxu0 0.0
    %825 = vmatpush1.msra.mxu0 0.0
    %826 = vmatprep.subr.mxu0 0.0
    %827 = vmatpush1.msra.mxu0 0.0
    %828 = vmatprep.subr.mxu0 0.0
    %829 = vmatpush1.msra.mxu0 0.0
    %830 = vmatprep.subr.mxu0 0.0
    %831 = vmatpush1.msra.mxu0 0.0
    %832 = vmatprep.subr.mxu0 0.0
    %833 = vmatpush1.msra.mxu0 0.0
    %834 = vmatprep.subr.mxu0 0.0
    %835 = vmatpush1.msra.mxu0 0.0
    %836 = vmatprep.subr.mxu0 0.0
    %837 = vmatpush1.msra.mxu0 0.0
    %838 = vmatprep.subr.mxu0 0.0
    %839 = vmatpush1.msra.mxu0 0.0
    %840 = vmatprep.subr.mxu0 0.0
    %841 = vmatpush1.msra.mxu0 0.0
    %842 = vmatprep.subr.mxu0 0.0
    %843 = vmatpush1.msra.mxu0 0.0
    %844 = vmatprep.subr.mxu0 0.0
    %845 = vmatpush1.msra.mxu0 0.0
    %846 = vmatprep.subr.mxu0 0.0
    %847 = vmatpush1.msra.mxu0 0.0
    %848 = vmatprep.subr.mxu0 0.0
    %849 = vmatpush1.msra.mxu0 0.0
    %850 = vmatprep.mubr.f32.mxu0 0.0
    %851 = vmatmul.mubr.f32.gmra.mrb[0].mxu0 %v784
    %v852 = vpop.f32.mrb[0].mxu0
    %v853 = vadd.f32 0.0, %v852
    %v854 = vpop.f32.mrb[0].mxu0
    %855 = vdwg.mxu0
    %v856 = vadd.f32 %v780, %v853
    %v857 = vsub.f32 0.0, %v856
    %v858 = vmul.f32 %v857, 1.442695
    %v859 = vpow.pop %v858
    %v860 = vadd.f32 %v859, 1.0
    %v861 = vrcp.pop %v860
    %v862 = vmul.f32 %v861, 2.0
    %v863 = vsub.f32 %v862, 1.0
    %v864 = vmul.f32 %v861, %v772
    %866 = vrot.lane.b32.xlu0 %v863, 64
    %v867 = vpop.permute.xlu0 %866
    %v869 = vmul.f32 %v861, %v867
    %871 = vrot.lane.b32.xlu0 %v869, 32
    %v872 = vpop.permute.xlu0 %871
    %v874 = vadd.f32 %v864, %v872
    %v875 = vtanh.pop %v874
    %877 = vrot.lane.b32.xlu0 %v875, 64
    %v878 = vpop.permute.xlu0 %877
    %v880 = vmul.f32 %v861, %v878
    %882 = vrot.lane.b32.xlu0 %v880, 32
    %v883 = vpop.permute.xlu0 %882
    %885 = vst.msk [vmem:[#allocation8] sm:$0xff] %vm68, %v883
    %887 = vrot.lane.b32.xlu0 %v874, 96
    %v888 = vpop.permute.xlu0 %887
    %890 = vst.msk [vmem:[#allocation9] sm:$0xff] %vm68, %v888
    %v891 = vld [vmem:[#allocation7] sm:$0xff]
    %v892 = vld [vmem:[#allocation7 + $0x8] sm:$0xff]
    %v893 = vld [vmem:[#allocation7 + $0x10] sm:$0xff]
    %v894 = vld [vmem:[#allocation7 + $0x18] sm:$0xff]
    %v895 = vld [vmem:[%s3] sm:$0x1]
    %v897 = vlaneseq
    %v898 = vshrl.u32 %v897, 7
    %v899 = vsub.s32 0, %v898
    %v900 = vrot.slane %v895, %v899
    %v902 = vsel %vm68, %v883, 0
    %904 = vmatprep.subr.mxu0 0.0
    %905 = vmatpush1.msra.mxu0 %v891
    %906 = vmatprep.subr.mxu0 0.0
    %907 = vmatpush1.msra.mxu0 %v892
    %908 = vmatprep.subr.mxu0 0.0
    %909 = vmatpush1.msra.mxu0 %v893
    %910 = vmatprep.subr.mxu0 0.0
    %911 = vmatpush1.msra.mxu0 %v894
    %912 = vmatprep.subr.mxu0 0.0
    %913 = vmatpush1.msra.mxu0 0.0
    %914 = vmatprep.subr.mxu0 0.0
    %915 = vmatpush1.msra.mxu0 0.0
    %916 = vmatprep.subr.mxu0 0.0
    %917 = vmatpush1.msra.mxu0 0.0
    %918 = vmatprep.subr.mxu0 0.0
    %919 = vmatpush1.msra.mxu0 0.0
    %920 = vmatprep.subr.mxu0 0.0
    %921 = vmatpush1.msra.mxu0 0.0
    %922 = vmatprep.subr.mxu0 0.0
    %923 = vmatpush1.msra.mxu0 0.0
    %924 = vmatprep.subr.mxu0 0.0
    %925 = vmatpush1.msra.mxu0 0.0
    %926 = vmatprep.subr.mxu0 0.0
    %927 = vmatpush1.msra.mxu0 0.0
    %928 = vmatprep.subr.mxu0 0.0
    %929 = vmatpush1.msra.mxu0 0.0
    %930 = vmatprep.subr.mxu0 0.0
    %931 = vmatpush1.msra.mxu0 0.0
    %932 = vmatprep.subr.mxu0 0.0
    %933 = vmatpush1.msra.mxu0 0.0
    %934 = vmatprep.subr.mxu0 0.0
    %935 = vmatpush1.msra.mxu0 0.0
    %936 = vmatprep.subr.mxu0 0.0
    %937 = vmatpush1.msra.mxu0 0.0
    %938 = vmatprep.subr.mxu0 0.0
    %939 = vmatpush1.msra.mxu0 0.0
    %940 = vmatprep.subr.mxu0 0.0
    %941 = vmatpush1.msra.mxu0 0.0
    %942 = vmatprep.subr.mxu0 0.0
    %943 = vmatpush1.msra.mxu0 0.0
    %944 = vmatprep.subr.mxu0 0.0
    %945 = vmatpush1.msra.mxu0 0.0
    %946 = vmatprep.subr.mxu0 0.0
    %947 = vmatpush1.msra.mxu0 0.0
    %948 = vmatprep.subr.mxu0 0.0
    %949 = vmatpush1.msra.mxu0 0.0
    %950 = vmatprep.subr.mxu0 0.0
    %951 = vmatpush1.msra.mxu0 0.0
    %952 = vmatprep.subr.mxu0 0.0
    %953 = vmatpush1.msra.mxu0 0.0
    %954 = vmatprep.subr.mxu0 0.0
    %955 = vmatpush1.msra.mxu0 0.0
    %956 = vmatprep.subr.mxu0 0.0
    %957 = vmatpush1.msra.mxu0 0.0
    %958 = vmatprep.subr.mxu0 0.0
    %959 = vmatpush1.msra.mxu0 0.0
    %960 = vmatprep.subr.mxu0 0.0
    %961 = vmatpush1.msra.mxu0 0.0
    %962 = vmatprep.subr.mxu0 0.0
    %963 = vmatpush1.msra.mxu0 0.0
    %964 = vmatprep.subr.mxu0 0.0
    %965 = vmatpush1.msra.mxu0 0.0
    %966 = vmatprep.subr.mxu0 0.0
    %967 = vmatpush1.msra.mxu0 0.0
    %968 = vmatprep.mubr.f32.mxu0 0.0
    %969 = vmatmul.mubr.f32.gmra.mrb[0].mxu0 %v902
    %v970 = vpop.f32.mrb[0].mxu0
    %v971 = vadd.f32 %v900, %v970
    %v972 = vpop.f32.mrb[0].mxu0
    %973 = vdwg.mxu0
    %974 = vst [vmem:[#allocation11] sm:$0xff] %v971
    // Predicated region
    $region30: #{tpu_custom_call.1} parent=1 // pred_check
      _
    $region31: #{tpu_custom_call.1} parent=1 // pred_check_branch
      %976 = sbr.rel (0) target = $region33
    $region32: #{tpu_custom_call.1} parent=1 // pred_region
      %s978 = ssub.s32 128, 128
      %979 = vsyncadd [#allocation4], %s978
      %s981 = sshll.u32 [#allocation8], 4
      %s982 = int_to_ptr.vmem [resolvable:$true] %s981
      %984 = dma.vmem_to_hbm [thread:$0]  %s982, 128, %s4, [#allocation4]
    $region33: #{tpu_custom_call.1} parent=1 // pred_fallthru
      _
    // Predicated region
    $region34: #{tpu_custom_call.1} parent=1 // pred_check
      _
    $region35: #{tpu_custom_call.1} parent=1 // pred_check_branch
      %986 = sbr.rel (0) target = $region37
    $region36: #{tpu_custom_call.1} parent=1 // pred_region
      %s988 = ssub.s32 128, 128
      %989 = vsyncadd [#allocation10], %s988
      %s991 = sshll.u32 [#allocation9], 4
      %s992 = int_to_ptr.vmem [resolvable:$true] %s991
      %994 = dma.vmem_to_hbm [thread:$0]  %s992, 128, %s5, [#allocation10]
    $region37: #{tpu_custom_call.1} parent=1 // pred_fallthru
      _
    // Predicated region
    $region38: #{tpu_custom_call.1} parent=1 // pred_check
      _
    $region39: #{tpu_custom_call.1} parent=1 // pred_check_branch
      %996 = sbr.rel (0) target = $region41
    $region40: #{tpu_custom_call.1} parent=1 // pred_region
      %s998 = ssub.s32 128, 128
      %999 = vsyncadd [#allocation10], %s998
      %s1001 = sshll.u32 [#allocation11], 4
      %s1002 = int_to_ptr.vmem [resolvable:$true] %s1001
      %1004 = dma.vmem_to_hbm [thread:$0]  %s1002, 128, %s6, [#allocation10]
    $region41: #{tpu_custom_call.1} parent=1 // pred_fallthru
      _
    // Predicated region
    $region42: #{tpu_custom_call.1} parent=1 // pred_check
      _
    $region43: #{tpu_custom_call.1} parent=1 // pred_check_branch
      %1006 = sbr.rel (0) target = $region45
    $region44: #{tpu_custom_call.1} parent=1 // pred_region
      %1007 = dma.done [#allocation4], 128
    $region45: #{tpu_custom_call.1} parent=1 // pred_fallthru
      _
    // Predicated region
    $region46: #{tpu_custom_call.1} parent=1 // pred_check
      _
    $region47: #{tpu_custom_call.1} parent=1 // pred_check_branch
      %1009 = sbr.rel (0) target = $region49
    $region48: #{tpu_custom_call.1} parent=1 // pred_region
      %1010 = dma.done [#allocation10], 128
    $region49: #{tpu_custom_call.1} parent=1 // pred_fallthru
      _
    // Predicated region
    $region50: #{tpu_custom_call.1} parent=1 // pred_check
      _
    $region51: #{tpu_custom_call.1} parent=1 // pred_check_branch
      %1012 = sbr.rel (0) target = $region53
    $region52: #{tpu_custom_call.1} parent=1 // pred_region
      %1013 = dma.done [#allocation10], 128
    $region53: #{tpu_custom_call.1} parent=1 // pred_fallthru
      _
    %1014 = vsyncpa [#allocation3], 1
    %1015 = vsyncpa [#allocation6], 1
    %1016 = vsyncpa [#allocation4], 1
    %1017 = vsyncpa [#allocation10], 1

</llo_original>
